<compile_context>
chip_gen: v7x
topology: tpu7x:2x2x1
jax: 0.10.0
libtpu: 0.0.40
codegen_flags: <defaults>
</compile_context>

<pallas_src>
import jax
import jax.numpy as jnp
from jax.experimental import pallas as pl
from jax.experimental.pallas import tpu as pltpu


def film_kernel(x_ref, p_ref, w_ref, b_ref, o_ref):
    # Shapes (leading batch dim squeezed by the BlockSpec):
    #   x_ref: (C, T)   features
    #   p_ref: (P, T)   conditioning params
    #   w_ref: (2C, P)  fused gamma/beta projection weights (pre-transposed)
    #   b_ref: (2C, 1)  fused gamma/beta bias (broadcast over lanes)
    #   o_ref: (C, T)
    C = o_ref.shape[0]
    p = p_ref[...].astype(jnp.float32)      # matches torch's p.float()
    x = x_ref[...].astype(jnp.float32)

    proj = jnp.dot(w_ref[...], p, preferred_element_type=jnp.float32) + b_ref[...]
    g = proj[:C]        # with C a multiple of 8 this is a sublane-aligned free slice
    b = proj[C:]

    o_ref[...] = (g * x + b).astype(o_ref.dtype)


def film_forward(x, p, weight, bias, *, tile_lanes=16384):
    """FiLM forward.

    x:      (N, C, L)
    p:      (N, P, L)
    weight: (P, 2C)   (ConvTranspose1d(P, 2C, 1).weight with the k dim squeezed)
    bias:   (2C,)
    returns (N, C, L), dtype == x.dtype
    """
    N, C, L = x.shape
    _, P, _ = p.shape

    # Lane tile: either the full L (small sequences — full-dim blocks are legal)
    # or a large multiple of 128 (sweepable 8192..32768).  No explicit pad: a
    # ragged last block is masked by Pallas on writeback.
    tile_lanes = max(128, (tile_lanes // 128) * 128)
    T = L if L <= tile_lanes else tile_lanes
    grid = (N, pl.cdiv(L, T))

    # Tiny one-time parameter prep (not a pass over activations).
    w2c = weight.T.astype(jnp.float32)                 # (2C, P)
    b2c = bias.reshape(2 * C, 1).astype(jnp.float32)   # (2C, 1)

    x_bytes = x.dtype.itemsize
    cost = pl.CostEstimate(
        flops=2 * N * L * (2 * C * P + C),
        transcendentals=0,
        bytes_accessed=N * L * (2 * C * x_bytes + P * p.dtype.itemsize),
    )

    return pl.pallas_call(
        film_kernel,
        out_shape=jax.ShapeDtypeStruct((N, C, L), x.dtype),
        grid_spec=pltpu.PrefetchScalarGridSpec(
            num_scalar_prefetch=0,
            grid=grid,
            in_specs=[
                pl.BlockSpec((None, C, T), lambda n, l: (n, 0, l)),   # x  (lane-tiled)
                pl.BlockSpec((None, P, T), lambda n, l: (n, 0, l)),   # p  (lane-tiled)
                pl.BlockSpec((2 * C, P), lambda n, l: (0, 0)),        # W  (resident)
                pl.BlockSpec((2 * C, 1), lambda n, l: (0, 0)),        # bias (resident)
            ],
            out_specs=pl.BlockSpec((None, C, T), lambda n, l: (n, 0, l)),
        ),
        compiler_params=pltpu.CompilerParams(
            dimension_semantics=("parallel", "parallel"),
        ),
        cost_estimate=cost,
    )(x, p, w2c, b2c)


def film_reference(x, p, weight, bias):
    # Pure-JAX reference of the PyTorch forward.
    proj = jnp.einsum("npl,po->nol", p.astype(jnp.float32), weight.astype(jnp.float32))
    proj = proj + bias.astype(jnp.float32)[None, :, None]
    C = x.shape[1]
    g, b = proj[:, :C, :], proj[:, C:, :]
    return (g * x.astype(jnp.float32) + b).astype(x.dtype)


if __name__ == "__main__":
    # Small shapes consistent with the module: batch=2, n_params=4,
    # n_channels=8, sequence length=16.
    N, P, C, L = 2, 4, 8, 16

    key = jax.random.PRNGKey(0)
    kx, kp, kw, kb = jax.random.split(key, 4)

    x = jax.random.normal(kx, (N, C, L), dtype=jnp.float32)
    p = jax.random.normal(kp, (N, P, L), dtype=jnp.float32)
    # ConvTranspose1d(P, 2C, 1).weight has shape (P, 2C, 1); kernel dim squeezed.
    weight = jax.random.normal(kw, (P, 2 * C), dtype=jnp.float32) * 0.1
    bias = jax.random.normal(kb, (2 * C,), dtype=jnp.float32) * 0.1

    out = film_forward(x, p, weight, bias)
    out = jax.block_until_ready(out)

    ref = film_reference(x, p, weight, bias)
    assert out.shape == (N, C, L)
    assert out.dtype == x.dtype
    assert jnp.allclose(out, ref, atol=1e-5, rtol=1e-5)

    print("KERNEL_OK")
</pallas_src>

<mosaic_0001>
module attributes {stable_mosaic.version = 11 : i64} {
  func.func @film_kernel(%arg0: i32, %arg1: i32, %arg2: memref<1x8x16xf32, #tpu.memory_space<vmem>>, %arg3: memref<1x4x16xf32, #tpu.memory_space<vmem>>, %arg4: memref<16x4xf32, #tpu.memory_space<vmem>>, %arg5: memref<16x1xf32, #tpu.memory_space<vmem>>, %arg6: memref<1x8x16xf32, #tpu.memory_space<vmem>>) attributes {dimension_semantics = [#tpu.dimension_semantics<parallel>, #tpu.dimension_semantics<parallel>], iteration_bounds = array<i64: 2, 1>, scalar_prefetch = 0 : i64, scratch_operands = 0 : i64, tpu.core_type = #tpu.core_type<tc>, window_params = [{transform_indices = @transform_0, window_bounds = array<i64: 1, 8, 16>}, {transform_indices = @transform_1, window_bounds = array<i64: 1, 4, 16>}, {pipeline_mode = #tpu.pipeline_mode<synchronous>, transform_indices = @transform_2, window_bounds = array<i64: 16, 4>}, {pipeline_mode = #tpu.pipeline_mode<synchronous>, transform_indices = @transform_3, window_bounds = array<i64: 16, 1>}, {transform_indices = @transform_4, window_bounds = array<i64: 1, 8, 16>}]} {
    %c0 = arith.constant 0 : index
    %c0_0 = arith.constant 0 : index
    %c0_1 = arith.constant 0 : index
    %0 = vector.load %arg3[%c0, %c0_0, %c0_1] : memref<1x4x16xf32, #tpu.memory_space<vmem>>, vector<1x4x16xf32>
    %1 = vector.shape_cast %0 : vector<1x4x16xf32> to vector<4x16xf32>
    %c0_2 = arith.constant 0 : index
    %c0_3 = arith.constant 0 : index
    %c0_4 = arith.constant 0 : index
    %2 = vector.load %arg2[%c0_2, %c0_3, %c0_4] : memref<1x8x16xf32, #tpu.memory_space<vmem>>, vector<1x8x16xf32>
    %3 = vector.shape_cast %2 : vector<1x8x16xf32> to vector<8x16xf32>
    %c0_5 = arith.constant 0 : index
    %c0_6 = arith.constant 0 : index
    %4 = vector.load %arg4[%c0_5, %c0_6] : memref<16x4xf32, #tpu.memory_space<vmem>>, vector<16x4xf32>
    %cst = arith.constant dense<0.000000e+00> : vector<16x16xf32>
    %5 = tpu.matmul %4, %1, %cst {dimension_numbers = #tpu.dot_dimension_numbers<[1], [0], [0], [1], [0, 0, 1, 1], [], []>} : vector<16x4xf32>, vector<4x16xf32>, vector<16x16xf32> -> vector<16x16xf32>
    %c0_7 = arith.constant 0 : index
    %c0_8 = arith.constant 0 : index
    %6 = vector.load %arg5[%c0_7, %c0_8] : memref<16x1xf32, #tpu.memory_space<vmem>>, vector<16x1xf32>
    %7 = vector.broadcast %6 : vector<16x1xf32> to vector<16x16xf32>
    %8 = arith.addf %5, %7 : vector<16x16xf32>
    %9 = vector.extract_strided_slice %8 {offsets = [0, 0], sizes = [8, 16], strides = [1, 1]} : vector<16x16xf32> to vector<8x16xf32>
    %10 = vector.extract_strided_slice %8 {offsets = [8, 0], sizes = [8, 16], strides = [1, 1]} : vector<16x16xf32> to vector<8x16xf32>
    %11 = arith.mulf %9, %3 : vector<8x16xf32>
    %12 = arith.addf %11, %10 : vector<8x16xf32>
    %c0_9 = arith.constant 0 : index
    %c0_10 = arith.constant 0 : index
    %c0_11 = arith.constant 0 : index
    %13 = vector.load %arg6[%c0_9, %c0_10, %c0_11] : memref<1x8x16xf32, #tpu.memory_space<vmem>>, vector<1x8x16xf32>
    %14 = vector.shape_cast %13 : vector<1x8x16xf32> to vector<8x16xf32>
    %15 = vector.shape_cast %12 : vector<8x16xf32> to vector<1x8x16xf32>
    tpu.vector_store %arg6[%c0_9, %c0_10, %c0_11], %15 {strides = array<i32>} : memref<1x8x16xf32, #tpu.memory_space<vmem>>, vector<1x8x16xf32>,
    return
  }
  func.func @transform_0(%arg0: i32, %arg1: i32) -> (i32, i32, i32) {
    %c0_i32 = arith.constant 0 : i32
    %c0_i32_0 = arith.constant 0 : i32
    return %arg0, %c0_i32, %arg1 : i32, i32, i32
  }
  func.func @transform_1(%arg0: i32, %arg1: i32) -> (i32, i32, i32) {
    %c0_i32 = arith.constant 0 : i32
    %c0_i32_0 = arith.constant 0 : i32
    return %arg0, %c0_i32, %arg1 : i32, i32, i32
  }
  func.func @transform_2(%arg0: i32, %arg1: i32) -> (i32, i32) {
    %c0_i32 = arith.constant 0 : i32
    %c0_i32_0 = arith.constant 0 : i32
    %c0_i32_1 = arith.constant 0 : i32
    return %c0_i32, %c0_i32_0 : i32, i32
  }
  func.func @transform_3(%arg0: i32, %arg1: i32) -> (i32, i32) {
    %c0_i32 = arith.constant 0 : i32
    %c0_i32_0 = arith.constant 0 : i32
    %c0_i32_1 = arith.constant 0 : i32
    return %c0_i32, %c0_i32_0 : i32, i32
  }
  func.func @transform_4(%arg0: i32, %arg1: i32) -> (i32, i32, i32) {
    %c0_i32 = arith.constant 0 : i32
    %c0_i32_0 = arith.constant 0 : i32
    return %arg0, %c0_i32, %arg1 : i32, i32, i32
  }
}

</mosaic_0001>

<llo_original>
// kernel: tpu_custom_call.1
$region0: #{tpu_custom_call.1}
  #allocation0 [shape = 'u32[]', space=smem, size = 0x4, offset = 0x4, fixed_abs, tag = 'smem constant byte address 0x4 - core index']
  #allocation1 [shape = 'u32[144,128]{1,0:T(1,128)}', space=vmem, size = 0x12000, scoped, tag = 'internal scratch']
  %s0 = inlined_call_operand.vmem [shape: f32[2,8,16], index: 0, kind: input, shape index: {}]
  %s1 = inlined_call_operand.vmem [shape: f32[2,4,16], index: 1, kind: input, shape index: {}]
  %s2 = inlined_call_operand.vmem [shape: f32[16,4], index: 2, kind: input, shape index: {}]
  %s3 = inlined_call_operand.vmem [shape: f32[16,1], index: 3, kind: input, shape index: {}]
  %s4 = inlined_call_operand.hbm [shape: f32[2,8,16], index: 4, kind: output, shape index: {}]
  %s5 = sld [smem:[#allocation0]]
  $region49: #{tpu_custom_call.1} parent=0
    _
  %s7 = ssub.s32 1, %s5
  %s8 = scalar_select 0, %s7, %s5
  $region1: #{tpu_custom_call.1} parent=0
    #allocation2 [shape = 'u8[8192]{0}', space=vmem, size = 0x2000, scoped, tag = 'output window, operand 0']
    #allocation3 [shape = 's32[2]{0}', space=sflag, size = 0x8, scoped, tag = 'scoped memory for tpu_custom_call.1']
    %9 = vsyncpa [#allocation3], 0
    %s10 = scalar_lea.sflag [#allocation3], 1
    %11 = vsyncpa %s10, 0
    loop: start=0, step=1, limit=4
    $region2: #{tpu_custom_call.1} parent=1 // loop_pre_header
      _
    $region3: #{tpu_custom_call.1} parent=1 // loop_header
      %s13 = sphi 0, %s17
      %p14 = scmp.ge.s32.totalorder %s13, 4
      %s20 = sphi 0, %s32
      %s21 = sphi 0, %s28
      %s22 = sphi 0, %s20
      %s23 = sphi 0, %s21
      %s24 = sphi 0, %s22
      %s25 = sphi 0, %s23
      %s37 = sphi 0, %s39
      %s40 = sphi 0, %s37
      %s41 = sphi 0, %s40
      %s57 = sphi 0, %s41
      %s65 = sphi 0, %s67
      %s68 = sphi 0, %s65
      %s69 = sphi 0, %s68
      %s85 = sphi 0, %s69
      %s89 = sphi 0, %s89
      %s91 = sphi 0, %s89
      %s92 = sphi 0, %s91
      %s106 = sphi 0, %s92
      %s110 = sphi 0, %s110
      %s112 = sphi 0, %s110
      %s113 = sphi 0, %s112
      %s127 = sphi 0, %s113
      %s135 = sphi 0, %s137
      %s138 = sphi 0, %s135
      %s139 = sphi 0, %s138
      %s155 = sphi 0, %s139
    $region4: #{tpu_custom_call.1} parent=1 // loop_header_branch
      %16 = sbr.rel (%p14) target = $region8
    $region5: #{tpu_custom_call.1} parent=1 // loop_body
      %s18 = ssub.s32 %s13, 1
      %s19 = ssub.s32 %s13, 2
      %s26 = sadd.s32 1, %s21
      %p27 = scmp.ge.s32.totalorder %s26, 1
      %s28 = scalar_select %p27, 0, %s26
      %s29 = sadd.s32 1, %s20
      %s30 = scalar_select %p27, %s29, %s20
      %p31 = scmp.ge.s32.totalorder %s30, 2
      %s32 = scalar_select %p31, 0, %s30
      %s33 = ssub.s32 %s20, %s32
      %s34 = ssub.s32 %s21, %s28
      %s35 = sor.u32 %s33, %s34
      %p36 = scmp.eq.s32.totalorder %s35, 0
      %s38 = sadd.s32 %s37, 1
      %s39 = scalar_select %p36, %s37, %s38
      %p42 = pneg %p36
      %p43 = scmp.eq.s32.totalorder %s13, 1
      %p44 = por %p42, %p43
      %p45 = scmp.ne.s32.totalorder %s37, %s40
      %p46 = scmp.eq.s32.totalorder %s13, 0
      %p47 = por %p45, %p46
      %p48 = scmp.ne.s32.totalorder %s37, %s40
      %p49 = scmp.eq.s32.totalorder %s18, 1
      %p50 = por %p48, %p49
      %p51 = scmp.ne.s32.totalorder %s40, %s41
      %p52 = scmp.eq.s32.totalorder %s18, 0
      %p53 = por %p51, %p52
      %p54 = scmp.ne.s32.totalorder %s40, %s41
      %p55 = scmp.eq.s32.totalorder %s19, 1
      %p56 = por %p54, %p55
      %p58 = scmp.ne.s32.totalorder %s41, %s57
      %p59 = scmp.eq.s32.totalorder %s19, 0
      %p60 = por %p58, %p59
      %s61 = ssub.s32 %s20, %s32
      %s62 = ssub.s32 %s21, %s28
      %s63 = sor.u32 %s61, %s62
      %p64 = scmp.eq.s32.totalorder %s63, 0
      %s66 = sadd.s32 %s65, 1
      %s67 = scalar_select %p64, %s65, %s66
      %p70 = pneg %p64
      %p71 = scmp.eq.s32.totalorder %s13, 1
      %p72 = por %p70, %p71
      %p73 = scmp.ne.s32.totalorder %s65, %s68
      %p74 = scmp.eq.s32.totalorder %s13, 0
      %p75 = por %p73, %p74
      %p76 = scmp.ne.s32.totalorder %s65, %s68
      %p77 = scmp.eq.s32.totalorder %s18, 1
      %p78 = por %p76, %p77
      %p79 = scmp.ne.s32.totalorder %s68, %s69
      %p80 = scmp.eq.s32.totalorder %s18, 0
      %p81 = por %p79, %p80
      %p82 = scmp.ne.s32.totalorder %s68, %s69
      %p83 = scmp.eq.s32.totalorder %s19, 1
      %p84 = por %p82, %p83
      %p86 = scmp.ne.s32.totalorder %s69, %s85
      %p87 = scmp.eq.s32.totalorder %s19, 0
      %p88 = por %p86, %p87
      %s90 = sadd.s32 %s89, 1
      %p93 = scmp.eq.s32.totalorder %s13, 1
      %p94 = scmp.ne.s32.totalorder %s89, %s91
      %p95 = scmp.eq.s32.totalorder %s13, 0
      %p96 = por %p94, %p95
      %p97 = scmp.ne.s32.totalorder %s89, %s91
      %p98 = scmp.eq.s32.totalorder %s18, 1
      %p99 = por %p97, %p98
      %p100 = scmp.ne.s32.totalorder %s91, %s92
      %p101 = scmp.eq.s32.totalorder %s18, 0
      %p102 = por %p100, %p101
      %p103 = scmp.ne.s32.totalorder %s91, %s92
      %p104 = scmp.eq.s32.totalorder %s19, 1
      %p105 = por %p103, %p104
      %p107 = scmp.ne.s32.totalorder %s92, %s106
      %p108 = scmp.eq.s32.totalorder %s19, 0
      %p109 = por %p107, %p108
      %s111 = sadd.s32 %s110, 1
      %p114 = scmp.eq.s32.totalorder %s13, 1
      %p115 = scmp.ne.s32.totalorder %s110, %s112
      %p116 = scmp.eq.s32.totalorder %s13, 0
      %p117 = por %p115, %p116
      %p118 = scmp.ne.s32.totalorder %s110, %s112
      %p119 = scmp.eq.s32.totalorder %s18, 1
      %p120 = por %p118, %p119
      %p121 = scmp.ne.s32.totalorder %s112, %s113
      %p122 = scmp.eq.s32.totalorder %s18, 0
      %p123 = por %p121, %p122
      %p124 = scmp.ne.s32.totalorder %s112, %s113
      %p125 = scmp.eq.s32.totalorder %s19, 1
      %p126 = por %p124, %p125
      %p128 = scmp.ne.s32.totalorder %s113, %s127
      %p129 = scmp.eq.s32.totalorder %s19, 0
      %p130 = por %p128, %p129
      %s131 = ssub.s32 %s20, %s32
      %s132 = ssub.s32 %s21, %s28
      %s133 = sor.u32 %s131, %s132
      %p134 = scmp.eq.s32.totalorder %s133, 0
      %s136 = sadd.s32 %s135, 1
      %s137 = scalar_select %p134, %s135, %s136
      %p140 = pneg %p134
      %p141 = scmp.eq.s32.totalorder %s13, 1
      %p142 = por %p140, %p141
      %p143 = scmp.ne.s32.totalorder %s135, %s138
      %p144 = scmp.eq.s32.totalorder %s13, 0
      %p145 = por %p143, %p144
      %p146 = scmp.ne.s32.totalorder %s135, %s138
      %p147 = scmp.eq.s32.totalorder %s18, 1
      %p148 = por %p146, %p147
      %p149 = scmp.ne.s32.totalorder %s138, %s139
      %p150 = scmp.eq.s32.totalorder %s18, 0
      %p151 = por %p149, %p150
      %p152 = scmp.ne.s32.totalorder %s138, %s139
      %p153 = scmp.eq.s32.totalorder %s19, 1
      %p154 = por %p152, %p153
      %p156 = scmp.ne.s32.totalorder %s139, %s155
      %p157 = scmp.eq.s32.totalorder %s19, 0
      %p158 = por %p156, %p157
      %p159 = scmp.le.s32.totalorder 1, %s13
      %p160 = scmp.lt.s32.totalorder %s13, 3
      %p161 = pnand %p159, %p160
      %p162 = pneg %p161
      // Predicated region
      $region9: #{tpu_custom_call.1} parent=5 // pred_check
        _
      $region10: #{tpu_custom_call.1} parent=5 // pred_check_branch
        %164 = sbr.rel (%p161) target = $region12
      $region11: #{tpu_custom_call.1} parent=5 // pred_region
        %s165 = ssub.s32 %s13, 1
        // Predicated region
        $region13: #{tpu_custom_call.1} parent=11 // pred_check
          %p166 = pneg %p102
        $region14: #{tpu_custom_call.1} parent=11 // pred_check_branch
          %168 = sbr.rel (%p166) target = $region16
        $region15: #{tpu_custom_call.1} parent=11 // pred_region
          _
        $region16: #{tpu_custom_call.1} parent=11 // pred_fallthru
          _
        // Predicated region
        $region17: #{tpu_custom_call.1} parent=11 // pred_check
          %p169 = pneg %p123
        $region18: #{tpu_custom_call.1} parent=11 // pred_check_branch
          %171 = sbr.rel (%p169) target = $region20
        $region19: #{tpu_custom_call.1} parent=11 // pred_region
          _
        $region20: #{tpu_custom_call.1} parent=11 // pred_fallthru
          _
      $region12: #{tpu_custom_call.1} parent=5 // pred_fallthru
        _
      %p172 = scmp.lt.s32.totalorder %s13, 2
      // Predicated region
      $region21: #{tpu_custom_call.1} parent=5 // pred_check
        %p173 = pneg %p172
      $region22: #{tpu_custom_call.1} parent=5 // pred_check_branch
        %175 = sbr.rel (%p173) target = $region24
      $region23: #{tpu_custom_call.1} parent=5 // pred_region
        // Predicated region
        $region25: #{tpu_custom_call.1} parent=23 // pred_check
          %p176 = pneg %p47
        $region26: #{tpu_custom_call.1} parent=23 // pred_check_branch
          %178 = sbr.rel (%p176) target = $region28
        $region27: #{tpu_custom_call.1} parent=23 // pred_region
          %p179 = scmp.lt.s32.totalorder %s20, 1
          %s180 = scalar_select %p179, %s20, 1
          %p181 = scmp.lt.s32.totalorder %s21, 0
          %s182 = scalar_select %p181, %s21, 0
          %s183 = sadd.s32 %s182, %s180
          %s184 = smul.addr %s183, 8
          %s185 = scalar_lea.vmem %s0, %s184
        $region28: #{tpu_custom_call.1} parent=23 // pred_fallthru
          _
        // Predicated region
        $region29: #{tpu_custom_call.1} parent=23 // pred_check
          %p186 = pneg %p75
        $region30: #{tpu_custom_call.1} parent=23 // pred_check_branch
          %188 = sbr.rel (%p186) target = $region32
        $region31: #{tpu_custom_call.1} parent=23 // pred_region
          %p189 = scmp.lt.s32.totalorder %s20, 1
          %s190 = scalar_select %p189, %s20, 1
          %p191 = scmp.lt.s32.totalorder %s21, 0
          %s192 = scalar_select %p191, %s21, 0
          %s193 = sadd.s32 %s192, %s190
          %s194 = smul.addr %s193, 4
          %s195 = scalar_lea.vmem %s1, %s194
        $region32: #{tpu_custom_call.1} parent=23 // pred_fallthru
          _
      $region24: #{tpu_custom_call.1} parent=5 // pred_fallthru
        _
      %p196 = scmp.le.s32.totalorder 1, %s13
      %p197 = scmp.lt.s32.totalorder %s13, 3
      %p198 = pnand %p196, %p197
      %p199 = pneg %p198
      // Predicated region
      $region33: #{tpu_custom_call.1} parent=5 // pred_check
        _
      $region34: #{tpu_custom_call.1} parent=5 // pred_check_branch
        %201 = sbr.rel (%p198) target = $region36
      $region35: #{tpu_custom_call.1} parent=5 // pred_region
        %s202 = ssub.s32 %s13, 1
        %p203 = scmp.lt.s32.totalorder %s22, 1
        %s204 = scalar_select %p203, %s22, 1
        %p205 = scmp.lt.s32.totalorder %s23, 0
        %s206 = scalar_select %p205, %s23, 0
        %s207 = sadd.s32 %s206, %s204
        %s208 = smul.addr %s207, 8
        %s209 = scalar_lea.vmem %s0, %s208
        %p210 = pneg %p53
        %p211 = pneg %p50
        %p212 = scmp.lt.s32.totalorder %s22, 1
        %s213 = scalar_select %p212, %s22, 1
        %p214 = scmp.lt.s32.totalorder %s23, 0
        %s215 = scalar_select %p214, %s23, 0
        %s216 = sadd.s32 %s215, %s213
        %s217 = smul.addr %s216, 4
        %s218 = scalar_lea.vmem %s1, %s217
        %p219 = pneg %p81
        %p220 = pneg %p78
        %p221 = pneg %p102
        %p222 = pneg %p99
        %p223 = pneg %p123
        %p224 = pneg %p120
        %p225 = pneg %p151
        %p226 = pneg %p148
        %s227 = sand.u32 %s138, 1
        %s228 = scalar_lea.sflag [#allocation3], %s227
        %s229 = sand.u32 %s138, 1
        %s230 = smul.addr %s229, 8
        %s231 = scalar_lea.vmem [#allocation2], %s230
        %p232 = scmp.lt.s32.totalorder %s22, 1
        %s233 = scalar_select %p232, %s22, 1
        %p234 = scmp.lt.s32.totalorder %s23, 0
        %s235 = scalar_select %p234, %s23, 0
        %s236 = sadd.s32 %s235, %s233
        %s237 = smul.addr %s236, 8
        %s238 = scalar_lea.vmem %s0, %s237
        %p239 = scmp.lt.s32.totalorder %s22, 1
        %s240 = scalar_select %p239, %s22, 1
        %p241 = scmp.lt.s32.totalorder %s23, 0
        %s242 = scalar_select %p241, %s23, 0
        %s243 = sadd.s32 %s242, %s240
        %s244 = smul.addr %s243, 4
        %s245 = scalar_lea.vmem %s1, %s244
        %v246 = vld [vmem:[%s245] sm:$0xf]
        %v247 = vld [vmem:[%s238] sm:$0xff]
        %v248 = vld [vmem:[%s2] sm:$0xff]
        %v249 = vld [vmem:[%s2 + $0x8] sm:$0xff]
        %v250 = vld [vmem:[%s3] sm:$0xff]
        %v251 = vld [vmem:[%s3 + $0x8] sm:$0xff]
        %253 = vset.pattern.permute.xlu0 0
        %254 = vperm.xlu0 %253, %v250
        %v255 = vpop.permute.xlu0 %254
        %258 = vset.pattern.permute.xlu0 0
        %259 = vperm.xlu0 %258, %v251
        %v260 = vpop.permute.xlu0 %259
        %vm262 = vcmask 31744
        %v264 = vsel %vm262, %v248, 0
        %v267 = vsel %vm262, %v249, 0
        %vm269 = vcmask 1043456
        %v271 = vsel %vm269, %v246, 0
        %273 = vmatprep.subr.mxu0 0.0
        %274 = vmatpush1.msra.mxu0 %v271
        %275 = vmatprep.subr.mxu0 0.0
        %276 = vmatpush1.msra.mxu0 0.0
        %277 = vmatprep.subr.mxu0 0.0
        %278 = vmatpush1.msra.mxu0 0.0
        %279 = vmatprep.subr.mxu0 0.0
        %280 = vmatpush1.msra.mxu0 0.0
        %281 = vmatprep.subr.mxu0 0.0
        %282 = vmatpush1.msra.mxu0 0.0
        %283 = vmatprep.subr.mxu0 0.0
        %284 = vmatpush1.msra.mxu0 0.0
        %285 = vmatprep.subr.mxu0 0.0
        %286 = vmatpush1.msra.mxu0 0.0
        %287 = vmatprep.subr.mxu0 0.0
        %288 = vmatpush1.msra.mxu0 0.0
        %289 = vmatprep.subr.mxu0 0.0
        %290 = vmatpush1.msra.mxu0 0.0
        %291 = vmatprep.subr.mxu0 0.0
        %292 = vmatpush1.msra.mxu0 0.0
        %293 = vmatprep.subr.mxu0 0.0
        %294 = vmatpush1.msra.mxu0 0.0
        %295 = vmatprep.subr.mxu0 0.0
        %296 = vmatpush1.msra.mxu0 0.0
        %297 = vmatprep.subr.mxu0 0.0
        %298 = vmatpush1.msra.mxu0 0.0
        %299 = vmatprep.subr.mxu0 0.0
        %300 = vmatpush1.msra.mxu0 0.0
        %301 = vmatprep.subr.mxu0 0.0
        %302 = vmatpush1.msra.mxu0 0.0
        %303 = vmatprep.subr.mxu0 0.0
        %304 = vmatpush1.msra.mxu0 0.0
        %305 = vmatprep.subr.mxu0 0.0
        %306 = vmatpush1.msra.mxu0 0.0
        %307 = vmatprep.subr.mxu0 0.0
        %308 = vmatpush1.msra.mxu0 0.0
        %309 = vmatprep.subr.mxu0 0.0
        %310 = vmatpush1.msra.mxu0 0.0
        %311 = vmatprep.subr.mxu0 0.0
        %312 = vmatpush1.msra.mxu0 0.0
        %313 = vmatprep.subr.mxu0 0.0
        %314 = vmatpush1.msra.mxu0 0.0
        %315 = vmatprep.subr.mxu0 0.0
        %316 = vmatpush1.msra.mxu0 0.0
        %317 = vmatprep.subr.mxu0 0.0
        %318 = vmatpush1.msra.mxu0 0.0
        %319 = vmatprep.subr.mxu0 0.0
        %320 = vmatpush1.msra.mxu0 0.0
        %321 = vmatprep.subr.mxu0 0.0
        %322 = vmatpush1.msra.mxu0 0.0
        %323 = vmatprep.subr.mxu0 0.0
        %324 = vmatpush1.msra.mxu0 0.0
        %325 = vmatprep.subr.mxu0 0.0
        %326 = vmatpush1.msra.mxu0 0.0
        %327 = vmatprep.subr.mxu0 0.0
        %328 = vmatpush1.msra.mxu0 0.0
        %329 = vmatprep.subr.mxu0 0.0
        %330 = vmatpush1.msra.mxu0 0.0
        %331 = vmatprep.subr.mxu0 0.0
        %332 = vmatpush1.msra.mxu0 0.0
        %333 = vmatprep.subr.mxu0 0.0
        %334 = vmatpush1.msra.mxu0 0.0
        %335 = vmatprep.subr.mxu0 0.0
        %336 = vmatpush1.msra.mxu0 0.0
        %337 = vmatprep.mubr.f32.mxu0 0.0
        %338 = vmatmul.mubr.f32.gmra.mrb[0].mxu0 %v264
        %v339 = vpop.f32.mrb[0].mxu0
        %v340 = vadd.f32 %v255, %v339
        %v341 = vpop.f32.mrb[0].mxu0
        %342 = vmatprep.mubr.f32.mxu0 0.0
        %343 = vmatmul.mubr.f32.gmra.mrb[0].mxu0 %v267
        %v344 = vpop.f32.mrb[0].mxu0
        %v345 = vadd.f32 %v260, %v344
        %v346 = vpop.f32.mrb[0].mxu0
        %347 = vdwg.mxu0
        %v348 = vmul.f32 %v340, %v247
        %v349 = vadd.f32 %v348, %v345
        %vm350 = vcmask 130048
        %351 = vst.msk [vmem:[%s231] sm:$0xff] %vm350, %v349
        %s352 = sand.u32 %s138, 1
        %s353 = scalar_lea.sflag [#allocation3], %s352
        %s354 = sand.u32 %s138, 1
        %s355 = smul.addr %s354, 8
        %s356 = scalar_lea.vmem [#allocation2], %s355
        // Predicated region
        $region37: #{tpu_custom_call.1} parent=35 // pred_check
          %p357 = pneg %p148
        $region38: #{tpu_custom_call.1} parent=35 // pred_check_branch
          %359 = sbr.rel (%p357) target = $region40
        $region39: #{tpu_custom_call.1} parent=35 // pred_region
          %s361 = ssub.s32 128, 128
          %362 = vsyncadd %s353, %s361
          %s363 = sadd.s32 %s23, %s22
          %s364 = smul.addr %s363, 128
          %s365 = scalar_lea.hbm %s4, %s364
          %s367 = sshll.u32 %s356, 4
          %s368 = int_to_ptr.vmem [resolvable:$true] %s367
          %370 = dma.vmem_to_hbm [thread:$0]  %s368, 128, %s365, %s353
        $region40: #{tpu_custom_call.1} parent=35 // pred_fallthru
          _
      $region36: #{tpu_custom_call.1} parent=5 // pred_fallthru
        _
      %p371 = scmp.le.s32.totalorder 2, %s13
      // Predicated region
      $region41: #{tpu_custom_call.1} parent=5 // pred_check
        %p372 = pneg %p371
      $region42: #{tpu_custom_call.1} parent=5 // pred_check_branch
        %374 = sbr.rel (%p372) target = $region44
      $region43: #{tpu_custom_call.1} parent=5 // pred_region
        %s375 = ssub.s32 %s13, 2
        // Predicated region
        $region45: #{tpu_custom_call.1} parent=43 // pred_check
          %p376 = pneg %p154
        $region46: #{tpu_custom_call.1} parent=43 // pred_check_branch
          %378 = sbr.rel (%p376) target = $region48
        $region47: #{tpu_custom_call.1} parent=43 // pred_region
          %s379 = sand.u32 %s139, 1
          %s380 = scalar_lea.sflag [#allocation3], %s379
          %s381 = sand.u32 %s139, 1
          %s382 = smul.addr %s381, 8
          %s383 = scalar_lea.vmem [#allocation2], %s382
          %384 = dma.done %s380, 128
        $region48: #{tpu_custom_call.1} parent=43 // pred_fallthru
          _
      $region44: #{tpu_custom_call.1} parent=5 // pred_fallthru
        _
    $region6: #{tpu_custom_call.1} parent=1 // loop_footer
      %s17 = sadd.s32 1, %s13
    $region7: #{tpu_custom_call.1} parent=1 // loop_footer_branch
      %12 = sbr.rel target = $region3
    $region8: #{tpu_custom_call.1} parent=1 // loop_exit
      _
    %385 = vsyncpa [#allocation3], 1
    %s386 = scalar_lea.sflag [#allocation3], 1
    %387 = vsyncpa %s386, 1

</llo_original>
